<compile_context>
chip_gen: v6e
topology: v6e:2x2x1
jax: 0.10.0
libtpu: 0.0.40
codegen_flags: <defaults>
</compile_context>

<pallas_src>
from functools import partial

import jax
import jax.numpy as jnp
from jax.experimental import pallas as pl
from jax.experimental.pallas import tpu as pltpu


def _round_up(n, m):
    return ((n + m - 1) // m) * m


def dan_kernel(ids_ref, emb_ref, w1_ref, b1_ref, w2_ref, b2_ref, w3_ref,
               b3_ref, out_ref, counts_ref, *, vocab_padded, inv_seq_len,
               negative_slope):
    """Fused DAN forward for one (batch-tile, seq-tile) grid step.

    ids_ref   : (TILE_S, TILE_B, 1) int32   streamed token ids (pad id -> zero row)
    emb_ref   : (Vp, Ep)   f32   VMEM-resident padded embedding table
    w1_ref    : (Ep, H1p)  f32   b1_ref : (1, H1p) f32
    w2_ref    : (H1p, H2p) f32   b2_ref : (1, H2p) f32
    w3_ref    : (H2p, Cp)  f32   b3_ref : (1, Cp)  f32 (-1e30 on padded classes)
    out_ref   : (TILE_B, Cp) f32 log-probabilities (padded classes junk)
    counts_ref: (TILE_B, Vp) f32 running token-count histogram over the sequence
    """
    s = pl.program_id(1)

    @pl.when(s == 0)
    def _():
        counts_ref[...] = jnp.zeros_like(counts_ref)

    # One-hot against the lane-dense padded vocab; reduce over the *leading*
    # sequence axis (pure VPU adds, no sublane/XLU reduce).
    ids = ids_ref[...]                                          # (ts, tb, 1)
    iota_v = jax.lax.broadcasted_iota(jnp.int32, (1, 1, vocab_padded), 2)
    onehot = (ids == iota_v).astype(jnp.float32)                # (ts, tb, Vp)
    counts_ref[...] += jnp.sum(onehot, axis=0)                  # (tb, Vp)

    @pl.when(s == pl.num_programs(1) - 1)
    def _():
        # Deep-averaging mean as a single MXU matmul: counts @ embedding / S.
        a = jnp.dot(counts_ref[...], emb_ref[...],
                    preferred_element_type=jnp.float32) * inv_seq_len

        def leaky_relu(v):
            return jnp.where(v > 0, v, negative_slope * v)

        h1 = leaky_relu(jnp.dot(a, w1_ref[...],
                                preferred_element_type=jnp.float32) + b1_ref[...])
        h2 = leaky_relu(jnp.dot(h1, w2_ref[...],
                                preferred_element_type=jnp.float32) + b2_ref[...])
        logits = jnp.dot(h2, w3_ref[...],
                         preferred_element_type=jnp.float32) + b3_ref[...]

        # numerically stable log_softmax over the (lane) class dim; stays f32
        # so the -1e30 padded-class bias is safe.
        m = jnp.max(logits, axis=1, keepdims=True)
        lse = m + jnp.log(jnp.sum(jnp.exp(logits - m), axis=1, keepdims=True))
        out_ref[...] = logits - lse


def dan_forward(token_ids, embedding_matrix, params, negative_slope,
                *, tile_b=None, tile_s=None):
    """DAN forward: only int32 ids are streamed; embedding table stays in VMEM."""
    w1, b1, w2, b2, w3, b3 = params
    B, S = token_ids.shape
    V, E = embedding_matrix.shape
    H1, H2, C = w1.shape[1], w2.shape[1], w3.shape[1]

    # ---- lane-dense zero-padding of all feature dims (exact math) ----
    Ep = _round_up(E, 128)
    H1p = _round_up(H1, 128)
    H2p = _round_up(H2, 128)
    Cp = _round_up(C, 128)
    Vp = _round_up(V + 1, 128)          # +1 dedicated pad id -> all-zero row
    pad_id = V

    embp = jnp.zeros((Vp, Ep), jnp.float32).at[:V, :E].set(embedding_matrix)
    w1p = jnp.zeros((Ep, H1p), jnp.float32).at[:E, :H1].set(w1)
    b1p = jnp.zeros((1, H1p), jnp.float32).at[:, :H1].set(b1)
    w2p = jnp.zeros((H1p, H2p), jnp.float32).at[:H1, :H2].set(w2)
    b2p = jnp.zeros((1, H2p), jnp.float32).at[:, :H2].set(b2)
    w3p = jnp.zeros((H2p, Cp), jnp.float32).at[:H2, :C].set(w3)
    b3p = jnp.full((1, Cp), -1e30, jnp.float32).at[:, :C].set(b3)

    # ---- tile sizes ----
    if tile_b is None:
        # >= 2 batch tiles whenever possible (v7x has 2 TensorCores); 8-granular.
        tile_b = max(8, min(128, _round_up((B + 1) // 2, 8)))
    tile_b = max(8, _round_up(int(tile_b), 8))
    Bp = _round_up(B, tile_b)

    if tile_s is None:
        # keep the per-step one-hot working set (tile_s * tile_b * Vp f32) ~2 MiB
        budget = 2 * 1024 * 1024
        tile_s = max(8, min(_round_up(S, 8),
                            (budget // (tile_b * Vp * 4)) // 8 * 8))
    tile_s = max(8, _round_up(int(tile_s), 8))
    Sp = _round_up(S, tile_s)

    # ---- pad the (tiny) int32 ids instead of any embedded tensor ----
    ids_p = jnp.full((Sp, Bp), pad_id, dtype=jnp.int32)
    ids_p = ids_p.at[:S, :B].set(token_ids.astype(jnp.int32).T)
    ids_p = ids_p[:, :, None]           # (Sp, Bp, 1): batch on sublanes

    # ---- per-generation VMEM budget (64 MiB on v7x, 128 MiB on v5e/v6e) ----
    try:
        vmem_cap = pltpu.get_tpu_info().vmem_capacity_bytes
    except Exception:
        vmem_cap = 64 * 1024 * 1024     # conservative (v7x-sized) fallback
    vmem_limit = int(vmem_cap * 0.6)

    resident_bytes = (Vp * Ep + Ep * H1p + H1p * H2p + H2p * Cp
                      + H1p + H2p + Cp + tile_b * Vp) * 4
    if 2 * resident_bytes > vmem_limit:
        # TODO(synk): streaming fallback for vocabularies too large for VMEM.
        raise ValueError("embedding table too large for the fused DAN kernel")

    grid = (Bp // tile_b, Sp // tile_s)
    kernel = partial(dan_kernel, vocab_padded=Vp, inv_seq_len=1.0 / S,
                     negative_slope=negative_slope)

    out_padded = pl.pallas_call(
        kernel,
        out_shape=jax.ShapeDtypeStruct((Bp, Cp), jnp.float32),
        grid_spec=pltpu.PrefetchScalarGridSpec(
            num_scalar_prefetch=0,
            grid=grid,
            in_specs=[
                pl.BlockSpec((tile_s, tile_b, 1), lambda i, s: (s, i, 0)),
                # grid-resident table/weights: constant index_map -> fetched once
                pl.BlockSpec((Vp, Ep), lambda i, s: (0, 0)),
                pl.BlockSpec((Ep, H1p), lambda i, s: (0, 0)),
                pl.BlockSpec((1, H1p), lambda i, s: (0, 0)),
                pl.BlockSpec((H1p, H2p), lambda i, s: (0, 0)),
                pl.BlockSpec((1, H2p), lambda i, s: (0, 0)),
                pl.BlockSpec((H2p, Cp), lambda i, s: (0, 0)),
                pl.BlockSpec((1, Cp), lambda i, s: (0, 0)),
            ],
            out_specs=pl.BlockSpec((tile_b, Cp), lambda i, s: (i, 0)),
            scratch_shapes=[pltpu.VMEM((tile_b, Vp), jnp.float32)],
        ),
        compiler_params=pltpu.CompilerParams(
            dimension_semantics=("parallel", "arbitrary"),
            vmem_limit_bytes=vmem_limit,
        ),
    )(ids_p, embp, w1p, b1p, w2p, b2p, w3p, b3p)

    return out_padded[:B, :C]


def _jax_reference(token_ids, embedding_matrix, params, negative_slope):
    """Pure-JAX f32 reference matching the PyTorch eval-mode forward."""
    w1, b1, w2, b2, w3, b3 = params
    x = jnp.take(embedding_matrix, token_ids, axis=0)       # (B, S, E)
    a = jnp.mean(x, axis=1)
    lrelu = lambda v: jnp.where(v > 0, v, negative_slope * v)
    h1 = lrelu(a @ w1 + b1)
    h2 = lrelu(h1 @ w2 + b2)
    logits = h2 @ w3 + b3
    return jax.nn.log_softmax(logits, axis=1)


if __name__ == "__main__":
    # Small, module-consistent shapes; grid = 2 batch tiles x 4 sequence tiles.
    vocab_size = 50
    embedding_dim = 32
    hidden_dim1 = 64
    hidden_dim2 = 32
    num_classes = 2
    batch = 16
    seq_len = 64
    negative_slope = 0.01

    key = jax.random.PRNGKey(0)
    k_emb, k_ids, kw1, kb1, kw2, kb2, kw3, kb3 = jax.random.split(key, 8)

    # Deterministic "pretrained" embedding matrix and Linear params.
    embedding_matrix = jax.random.normal(
        k_emb, (vocab_size, embedding_dim), dtype=jnp.float32)

    def linear_init(kw, kb, fan_in, fan_out):
        bound = 1.0 / (fan_in ** 0.5)
        w = jax.random.uniform(kw, (fan_in, fan_out), jnp.float32, -bound, bound)
        b = jax.random.uniform(kb, (1, fan_out), jnp.float32, -bound, bound)
        return w, b

    w1, b1 = linear_init(kw1, kb1, embedding_dim, hidden_dim1)
    w2, b2 = linear_init(kw2, kb2, hidden_dim1, hidden_dim2)
    w3, b3 = linear_init(kw3, kb3, hidden_dim2, num_classes)
    params = (w1, b1, w2, b2, w3, b3)

    # Token-id batch (LongTensor analogue).
    token_ids = jax.random.randint(k_ids, (batch, seq_len), 0, vocab_size,
                                   dtype=jnp.int32)

    log_probs = dan_forward(token_ids, embedding_matrix, params,
                            negative_slope, tile_b=8, tile_s=16)
    log_probs = jax.block_until_ready(log_probs)

    ref = _jax_reference(token_ids, embedding_matrix, params, negative_slope)
    assert log_probs.shape == (batch, num_classes)
    assert jnp.allclose(log_probs, ref, atol=5e-3, rtol=5e-3), \
        "mismatch vs JAX reference"

    print("KERNEL_OK")
</pallas_src>

<mosaic_0001>
module attributes {stable_mosaic.version = 11 : i64} {
  func.func @dan_kernel(%arg0: i32, %arg1: i32, %arg2: memref<16x8x1xi32, #tpu.memory_space<vmem>>, %arg3: memref<128x128xf32, #tpu.memory_space<vmem>>, %arg4: memref<128x128xf32, #tpu.memory_space<vmem>>, %arg5: memref<1x128xf32, #tpu.memory_space<vmem>>, %arg6: memref<128x128xf32, #tpu.memory_space<vmem>>, %arg7: memref<1x128xf32, #tpu.memory_space<vmem>>, %arg8: memref<128x128xf32, #tpu.memory_space<vmem>>, %arg9: memref<1x128xf32, #tpu.memory_space<vmem>>, %arg10: memref<8x128xf32, #tpu.memory_space<vmem>>, %arg11: memref<8x128xf32, #tpu.memory_space<vmem>>) attributes {dimension_semantics = [#tpu.dimension_semantics<parallel>, #tpu.dimension_semantics<arbitrary>], iteration_bounds = array<i64: 2, 4>, scalar_prefetch = 0 : i64, scratch_operands = 1 : i64, tpu.core_type = #tpu.core_type<tc>, window_params = [{transform_indices = @transform_0, window_bounds = array<i64: 16, 8, 1>}, {pipeline_mode = #tpu.pipeline_mode<synchronous>, transform_indices = @transform_1, window_bounds = array<i64: 128, 128>}, {pipeline_mode = #tpu.pipeline_mode<synchronous>, transform_indices = @transform_2, window_bounds = array<i64: 128, 128>}, {pipeline_mode = #tpu.pipeline_mode<synchronous>, transform_indices = @transform_3, window_bounds = array<i64: 1, 128>}, {pipeline_mode = #tpu.pipeline_mode<synchronous>, transform_indices = @transform_4, window_bounds = array<i64: 128, 128>}, {pipeline_mode = #tpu.pipeline_mode<synchronous>, transform_indices = @transform_5, window_bounds = array<i64: 1, 128>}, {pipeline_mode = #tpu.pipeline_mode<synchronous>, transform_indices = @transform_6, window_bounds = array<i64: 128, 128>}, {pipeline_mode = #tpu.pipeline_mode<synchronous>, transform_indices = @transform_7, window_bounds = array<i64: 1, 128>}, {transform_indices = @transform_8, window_bounds = array<i64: 8, 128>}]} {
    %c0_i32 = arith.constant 0 : i32
    %0 = arith.cmpi eq, %arg1, %c0_i32 : i32
    %1 = arith.extui %0 : i1 to i32
    %c0_i32_0 = arith.constant 0 : i32
    %2 = arith.cmpi ne, %1, %c0_i32_0 : i32
    scf.if %2 {
      %cst_8 = arith.constant 0.000000e+00 : f32
      %17 = vector.broadcast %cst_8 : f32 to vector<8x128xf32>
      %c0_9 = arith.constant 0 : index
      %c0_10 = arith.constant 0 : index
      %18 = vector.load %arg11[%c0_9, %c0_10] : memref<8x128xf32, #tpu.memory_space<vmem>>, vector<8x128xf32>
      tpu.vector_store %arg11[%c0_9, %c0_10], %17 {strides = array<i32>} : memref<8x128xf32, #tpu.memory_space<vmem>>, vector<8x128xf32>,
    } else {
    }
    %c0 = arith.constant 0 : index
    %c0_1 = arith.constant 0 : index
    %c0_2 = arith.constant 0 : index
    %3 = vector.load %arg2[%c0, %c0_1, %c0_2] : memref<16x8x1xi32, #tpu.memory_space<vmem>>, vector<16x8x1xi32>
    %4 = tpu.iota {dimensions = array<i32: 2>} : vector<1x1x128xi32>
    %5 = vector.broadcast %3 : vector<16x8x1xi32> to vector<16x8x128xi32>
    %6 = vector.broadcast %4 : vector<1x1x128xi32> to vector<16x8x128xi32>
    %7 = arith.cmpi eq, %5, %6 : vector<16x8x128xi32>
    %8 = arith.extui %7 : vector<16x8x128xi1> to vector<16x8x128xi32>
    %9 = arith.sitofp %8 : vector<16x8x128xi32> to vector<16x8x128xf32>
    %c0_3 = arith.constant 0 : index
    %c0_4 = arith.constant 0 : index
    %10 = vector.load %arg11[%c0_3, %c0_4] : memref<8x128xf32, #tpu.memory_space<vmem>>, vector<8x128xf32>
    %cst = arith.constant dense<0.000000e+00> : vector<8x128xf32>
    %11 = vector.multi_reduction <add>, %9, %cst [0] : vector<16x8x128xf32> to vector<8x128xf32>
    %12 = arith.addf %10, %11 : vector<8x128xf32>
    %c0_5 = arith.constant 0 : index
    %c0_6 = arith.constant 0 : index
    %13 = vector.load %arg11[%c0_5, %c0_6] : memref<8x128xf32, #tpu.memory_space<vmem>>, vector<8x128xf32>
    tpu.vector_store %arg11[%c0_5, %c0_6], %12 {strides = array<i32>} : memref<8x128xf32, #tpu.memory_space<vmem>>, vector<8x128xf32>,
    %c3_i32 = arith.constant 3 : i32
    %14 = arith.cmpi eq, %arg1, %c3_i32 : i32
    %15 = arith.extui %14 : i1 to i32
    %c0_i32_7 = arith.constant 0 : i32
    %16 = arith.cmpi ne, %15, %c0_i32_7 : i32
    scf.if %16 {
      %c0_8 = arith.constant 0 : index
      %c0_9 = arith.constant 0 : index
      %17 = vector.load %arg11[%c0_8, %c0_9] : memref<8x128xf32, #tpu.memory_space<vmem>>, vector<8x128xf32>
      %c0_10 = arith.constant 0 : index
      %c0_11 = arith.constant 0 : index
      %18 = vector.load %arg3[%c0_10, %c0_11] : memref<128x128xf32, #tpu.memory_space<vmem>>, vector<128x128xf32>
      %cst_12 = arith.constant dense<0.000000e+00> : vector<8x128xf32>
      %19 = tpu.matmul %17, %18, %cst_12 {dimension_numbers = #tpu.dot_dimension_numbers<[1], [0], [0], [1], [0, 0, 1, 1], [], []>} : vector<8x128xf32>, vector<128x128xf32>, vector<8x128xf32> -> vector<8x128xf32>
      %cst_13 = arith.constant 1.562500e-02 : f32
      %20 = vector.broadcast %cst_13 : f32 to vector<8x128xf32>
      %21 = arith.mulf %19, %20 : vector<8x128xf32>
      %c0_14 = arith.constant 0 : index
      %c0_15 = arith.constant 0 : index
      %22 = vector.load %arg4[%c0_14, %c0_15] : memref<128x128xf32, #tpu.memory_space<vmem>>, vector<128x128xf32>
      %cst_16 = arith.constant dense<0.000000e+00> : vector<8x128xf32>
      %23 = tpu.matmul %21, %22, %cst_16 {dimension_numbers = #tpu.dot_dimension_numbers<[1], [0], [0], [1], [0, 0, 1, 1], [], []>} : vector<8x128xf32>, vector<128x128xf32>, vector<8x128xf32> -> vector<8x128xf32>
      %c0_17 = arith.constant 0 : index
      %c0_18 = arith.constant 0 : index
      %24 = vector.load %arg5[%c0_17, %c0_18] : memref<1x128xf32, #tpu.memory_space<vmem>>, vector<1x128xf32>
      %25 = vector.broadcast %24 : vector<1x128xf32> to vector<8x128xf32>
      %26 = arith.addf %23, %25 : vector<8x128xf32>
      %cst_19 = arith.constant 0.000000e+00 : f32
      %27 = vector.broadcast %cst_19 : f32 to vector<8x128xf32>
      %28 = arith.cmpf ogt, %26, %27 : vector<8x128xf32>
      %cst_20 = arith.constant 0.00999999977 : f32
      %29 = vector.broadcast %cst_20 : f32 to vector<8x128xf32>
      %30 = arith.mulf %29, %26 : vector<8x128xf32>
      %31 = arith.select %28, %26, %30 : vector<8x128xi1>, vector<8x128xf32>
      %c0_21 = arith.constant 0 : index
      %c0_22 = arith.constant 0 : index
      %32 = vector.load %arg6[%c0_21, %c0_22] : memref<128x128xf32, #tpu.memory_space<vmem>>, vector<128x128xf32>
      %cst_23 = arith.constant dense<0.000000e+00> : vector<8x128xf32>
      %33 = tpu.matmul %31, %32, %cst_23 {dimension_numbers = #tpu.dot_dimension_numbers<[1], [0], [0], [1], [0, 0, 1, 1], [], []>} : vector<8x128xf32>, vector<128x128xf32>, vector<8x128xf32> -> vector<8x128xf32>
      %c0_24 = arith.constant 0 : index
      %c0_25 = arith.constant 0 : index
      %34 = vector.load %arg7[%c0_24, %c0_25] : memref<1x128xf32, #tpu.memory_space<vmem>>, vector<1x128xf32>
      %35 = vector.broadcast %34 : vector<1x128xf32> to vector<8x128xf32>
      %36 = arith.addf %33, %35 : vector<8x128xf32>
      %cst_26 = arith.constant 0.000000e+00 : f32
      %37 = vector.broadcast %cst_26 : f32 to vector<8x128xf32>
      %38 = arith.cmpf ogt, %36, %37 : vector<8x128xf32>
      %cst_27 = arith.constant 0.00999999977 : f32
      %39 = vector.broadcast %cst_27 : f32 to vector<8x128xf32>
      %40 = arith.mulf %39, %36 : vector<8x128xf32>
      %41 = arith.select %38, %36, %40 : vector<8x128xi1>, vector<8x128xf32>
      %c0_28 = arith.constant 0 : index
      %c0_29 = arith.constant 0 : index
      %42 = vector.load %arg8[%c0_28, %c0_29] : memref<128x128xf32, #tpu.memory_space<vmem>>, vector<128x128xf32>
      %cst_30 = arith.constant dense<0.000000e+00> : vector<8x128xf32>
      %43 = tpu.matmul %41, %42, %cst_30 {dimension_numbers = #tpu.dot_dimension_numbers<[1], [0], [0], [1], [0, 0, 1, 1], [], []>} : vector<8x128xf32>, vector<128x128xf32>, vector<8x128xf32> -> vector<8x128xf32>
      %c0_31 = arith.constant 0 : index
      %c0_32 = arith.constant 0 : index
      %44 = vector.load %arg9[%c0_31, %c0_32] : memref<1x128xf32, #tpu.memory_space<vmem>>, vector<1x128xf32>
      %45 = vector.broadcast %44 : vector<1x128xf32> to vector<8x128xf32>
      %46 = arith.addf %43, %45 : vector<8x128xf32>
      %cst_33 = arith.constant dense<0xFF800000> : vector<8xf32>
      %47 = vector.multi_reduction <maximumf>, %46, %cst_33 [1] : vector<8x128xf32> to vector<8xf32>
      %48 = vector.shape_cast %47 : vector<8xf32> to vector<8x1xf32>
      %49 = vector.broadcast %48 : vector<8x1xf32> to vector<8x128xf32>
      %50 = arith.subf %46, %49 : vector<8x128xf32>
      %51 = math.exp %50 : vector<8x128xf32>
      %cst_34 = arith.constant dense<0.000000e+00> : vector<8xf32>
      %52 = vector.multi_reduction <add>, %51, %cst_34 [1] : vector<8x128xf32> to vector<8xf32>
      %53 = vector.shape_cast %52 : vector<8xf32> to vector<8x1xf32>
      %54 = math.log %53 : vector<8x1xf32>
      %55 = arith.addf %48, %54 : vector<8x1xf32>
      %56 = vector.broadcast %55 : vector<8x1xf32> to vector<8x128xf32>
      %57 = arith.subf %46, %56 : vector<8x128xf32>
      %c0_35 = arith.constant 0 : index
      %c0_36 = arith.constant 0 : index
      %58 = vector.load %arg10[%c0_35, %c0_36] : memref<8x128xf32, #tpu.memory_space<vmem>>, vector<8x128xf32>
      tpu.vector_store %arg10[%c0_35, %c0_36], %57 {strides = array<i32>} : memref<8x128xf32, #tpu.memory_space<vmem>>, vector<8x128xf32>,
    } else {
    }
    return
  }
  func.func @transform_0(%arg0: i32, %arg1: i32) -> (i32, i32, i32) {
    %c0_i32 = arith.constant 0 : i32
    %c0_i32_0 = arith.constant 0 : i32
    return %arg1, %arg0, %c0_i32 : i32, i32, i32
  }
  func.func @transform_1(%arg0: i32, %arg1: i32) -> (i32, i32) {
    %c0_i32 = arith.constant 0 : i32
    %c0_i32_0 = arith.constant 0 : i32
    %c0_i32_1 = arith.constant 0 : i32
    return %c0_i32, %c0_i32_0 : i32, i32
  }
  func.func @transform_2(%arg0: i32, %arg1: i32) -> (i32, i32) {
    %c0_i32 = arith.constant 0 : i32
    %c0_i32_0 = arith.constant 0 : i32
    %c0_i32_1 = arith.constant 0 : i32
    return %c0_i32, %c0_i32_0 : i32, i32
  }
  func.func @transform_3(%arg0: i32, %arg1: i32) -> (i32, i32) {
    %c0_i32 = arith.constant 0 : i32
    %c0_i32_0 = arith.constant 0 : i32
    %c0_i32_1 = arith.constant 0 : i32
    return %c0_i32, %c0_i32_0 : i32, i32
  }
  func.func @transform_4(%arg0: i32, %arg1: i32) -> (i32, i32) {
    %c0_i32 = arith.constant 0 : i32
    %c0_i32_0 = arith.constant 0 : i32
    %c0_i32_1 = arith.constant 0 : i32
    return %c0_i32, %c0_i32_0 : i32, i32
  }
  func.func @transform_5(%arg0: i32, %arg1: i32) -> (i32, i32) {
    %c0_i32 = arith.constant 0 : i32
    %c0_i32_0 = arith.constant 0 : i32
    %c0_i32_1 = arith.constant 0 : i32
    return %c0_i32, %c0_i32_0 : i32, i32
  }
  func.func @transform_6(%arg0: i32, %arg1: i32) -> (i32, i32) {
    %c0_i32 = arith.constant 0 : i32
    %c0_i32_0 = arith.constant 0 : i32
    %c0_i32_1 = arith.constant 0 : i32
    return %c0_i32, %c0_i32_0 : i32, i32
  }
  func.func @transform_7(%arg0: i32, %arg1: i32) -> (i32, i32) {
    %c0_i32 = arith.constant 0 : i32
    %c0_i32_0 = arith.constant 0 : i32
    %c0_i32_1 = arith.constant 0 : i32
    return %c0_i32, %c0_i32_0 : i32, i32
  }
  func.func @transform_8(%arg0: i32, %arg1: i32) -> (i32, i32) {
    %c0_i32 = arith.constant 0 : i32
    %c0_i32_0 = arith.constant 0 : i32
    return %arg0, %c0_i32 : i32, i32
  }
}

</mosaic_0001>

<llo_original>
// kernel: tpu_custom_call.1
$region0: #{tpu_custom_call.1}
  #allocation0 [shape = 'u32[]', space=smem, size = 0x4, offset = 0x4, fixed_abs, tag = 'smem constant byte address 0x4 - core index']
  #allocation1 [shape = 'u32[144,128]{1,0:T(1,128)}', space=vmem, size = 0x12000, scoped, tag = 'internal scratch']
  #allocation2 [shape = 'f32[8,128]{1,0:T(8,128)}', space=vmem, size = 0x1000, scoped, tag = 'scratch operand']
  %s0 = inlined_call_operand.vmem [shape: s32[64,16,1], index: 0, kind: input, shape index: {}]
  %s1 = inlined_call_operand.vmem [shape: f32[128,128], index: 1, kind: input, shape index: {}]
  %s2 = inlined_call_operand.vmem [shape: f32[128,128], index: 2, kind: input, shape index: {}]
  %s3 = inlined_call_operand.vmem [shape: f32[1,128], index: 3, kind: input, shape index: {}]
  %s4 = inlined_call_operand.vmem [shape: f32[128,128], index: 4, kind: input, shape index: {}]
  %s5 = inlined_call_operand.vmem [shape: f32[1,128], index: 5, kind: input, shape index: {}]
  %s6 = inlined_call_operand.vmem [shape: f32[128,128], index: 6, kind: input, shape index: {}]
  %s7 = inlined_call_operand.vmem [shape: f32[1,128], index: 7, kind: input, shape index: {}]
  %s8 = inlined_call_operand.hbm [shape: f32[16,128], index: 8, kind: output, shape index: {}]
  %s9 = sld [smem:[#allocation0]]
  $region111: #{tpu_custom_call.1} parent=0
    _
  %s11 = ssub.s32 1, %s9
  %s12 = scalar_select 0, %s11, %s9
  $region1: #{tpu_custom_call.1} parent=0
    #allocation3 [shape = 'u8[131072]{0}', space=vmem, size = 0x20000, scoped, tag = 'input window, operand 0']
    #allocation4 [shape = 'u8[8192]{0}', space=vmem, size = 0x2000, scoped, tag = 'output window, operand 0']
    #allocation5 [shape = 's32[2]{0}', space=sflag, size = 0x8, scoped, tag = 'scoped memory for tpu_custom_call.1']
    %13 = vsyncpa [#allocation5], 0
    %s14 = scalar_lea.sflag [#allocation5], 1
    %15 = vsyncpa %s14, 0
    loop: start=0, step=1, limit=10
    $region2: #{tpu_custom_call.1} parent=1 // loop_pre_header
      _
    $region3: #{tpu_custom_call.1} parent=1 // loop_header
      %s17 = sphi 0, %s21
      %p18 = scmp.ge.s32.totalorder %s17, 10
      %s24 = sphi 0, %s36
      %s25 = sphi 0, %s32
      %s26 = sphi 0, %s24
      %s27 = sphi 0, %s25
      %s28 = sphi 0, %s26
      %s29 = sphi 0, %s27
      %s41 = sphi 0, %s43
      %s44 = sphi 0, %s41
      %s45 = sphi 0, %s44
      %s61 = sphi 0, %s45
      %s65 = sphi 0, %s65
      %s67 = sphi 0, %s65
      %s68 = sphi 0, %s67
      %s82 = sphi 0, %s68
      %s86 = sphi 0, %s86
      %s88 = sphi 0, %s86
      %s89 = sphi 0, %s88
      %s103 = sphi 0, %s89
      %s107 = sphi 0, %s107
      %s109 = sphi 0, %s107
      %s110 = sphi 0, %s109
      %s124 = sphi 0, %s110
      %s128 = sphi 0, %s128
      %s130 = sphi 0, %s128
      %s131 = sphi 0, %s130
      %s145 = sphi 0, %s131
      %s149 = sphi 0, %s149
      %s151 = sphi 0, %s149
      %s152 = sphi 0, %s151
      %s166 = sphi 0, %s152
      %s170 = sphi 0, %s170
      %s172 = sphi 0, %s170
      %s173 = sphi 0, %s172
      %s187 = sphi 0, %s173
      %s191 = sphi 0, %s191
      %s193 = sphi 0, %s191
      %s194 = sphi 0, %s193
      %s208 = sphi 0, %s194
      %s214 = sphi 0, %s216
      %s217 = sphi 0, %s214
      %s218 = sphi 0, %s217
      %s234 = sphi 0, %s218
    $region4: #{tpu_custom_call.1} parent=1 // loop_header_branch
      %20 = sbr.rel (%p18) target = $region8
    $region5: #{tpu_custom_call.1} parent=1 // loop_body
      %s22 = ssub.s32 %s17, 1
      %s23 = ssub.s32 %s17, 2
      %s30 = sadd.s32 1, %s25
      %p31 = scmp.ge.s32.totalorder %s30, 4
      %s32 = scalar_select %p31, 0, %s30
      %s33 = sadd.s32 1, %s24
      %s34 = scalar_select %p31, %s33, %s24
      %p35 = scmp.ge.s32.totalorder %s34, 2
      %s36 = scalar_select %p35, 0, %s34
      %s37 = ssub.s32 %s25, %s32
      %s38 = ssub.s32 %s24, %s36
      %s39 = sor.u32 %s37, %s38
      %p40 = scmp.eq.s32.totalorder %s39, 0
      %s42 = sadd.s32 %s41, 1
      %s43 = scalar_select %p40, %s41, %s42
      %p46 = pneg %p40
      %p47 = scmp.eq.s32.totalorder %s17, 7
      %p48 = por %p46, %p47
      %p49 = scmp.ne.s32.totalorder %s41, %s44
      %p50 = scmp.eq.s32.totalorder %s17, 0
      %p51 = por %p49, %p50
      %p52 = scmp.ne.s32.totalorder %s41, %s44
      %p53 = scmp.eq.s32.totalorder %s22, 7
      %p54 = por %p52, %p53
      %p55 = scmp.ne.s32.totalorder %s44, %s45
      %p56 = scmp.eq.s32.totalorder %s22, 0
      %p57 = por %p55, %p56
      %p58 = scmp.ne.s32.totalorder %s44, %s45
      %p59 = scmp.eq.s32.totalorder %s23, 7
      %p60 = por %p58, %p59
      %p62 = scmp.ne.s32.totalorder %s45, %s61
      %p63 = scmp.eq.s32.totalorder %s23, 0
      %p64 = por %p62, %p63
      %s66 = sadd.s32 %s65, 1
      %p69 = scmp.eq.s32.totalorder %s17, 7
      %p70 = scmp.ne.s32.totalorder %s65, %s67
      %p71 = scmp.eq.s32.totalorder %s17, 0
      %p72 = por %p70, %p71
      %p73 = scmp.ne.s32.totalorder %s65, %s67
      %p74 = scmp.eq.s32.totalorder %s22, 7
      %p75 = por %p73, %p74
      %p76 = scmp.ne.s32.totalorder %s67, %s68
      %p77 = scmp.eq.s32.totalorder %s22, 0
      %p78 = por %p76, %p77
      %p79 = scmp.ne.s32.totalorder %s67, %s68
      %p80 = scmp.eq.s32.totalorder %s23, 7
      %p81 = por %p79, %p80
      %p83 = scmp.ne.s32.totalorder %s68, %s82
      %p84 = scmp.eq.s32.totalorder %s23, 0
      %p85 = por %p83, %p84
      %s87 = sadd.s32 %s86, 1
      %p90 = scmp.eq.s32.totalorder %s17, 7
      %p91 = scmp.ne.s32.totalorder %s86, %s88
      %p92 = scmp.eq.s32.totalorder %s17, 0
      %p93 = por %p91, %p92
      %p94 = scmp.ne.s32.totalorder %s86, %s88
      %p95 = scmp.eq.s32.totalorder %s22, 7
      %p96 = por %p94, %p95
      %p97 = scmp.ne.s32.totalorder %s88, %s89
      %p98 = scmp.eq.s32.totalorder %s22, 0
      %p99 = por %p97, %p98
      %p100 = scmp.ne.s32.totalorder %s88, %s89
      %p101 = scmp.eq.s32.totalorder %s23, 7
      %p102 = por %p100, %p101
      %p104 = scmp.ne.s32.totalorder %s89, %s103
      %p105 = scmp.eq.s32.totalorder %s23, 0
      %p106 = por %p104, %p105
      %s108 = sadd.s32 %s107, 1
      %p111 = scmp.eq.s32.totalorder %s17, 7
      %p112 = scmp.ne.s32.totalorder %s107, %s109
      %p113 = scmp.eq.s32.totalorder %s17, 0
      %p114 = por %p112, %p113
      %p115 = scmp.ne.s32.totalorder %s107, %s109
      %p116 = scmp.eq.s32.totalorder %s22, 7
      %p117 = por %p115, %p116
      %p118 = scmp.ne.s32.totalorder %s109, %s110
      %p119 = scmp.eq.s32.totalorder %s22, 0
      %p120 = por %p118, %p119
      %p121 = scmp.ne.s32.totalorder %s109, %s110
      %p122 = scmp.eq.s32.totalorder %s23, 7
      %p123 = por %p121, %p122
      %p125 = scmp.ne.s32.totalorder %s110, %s124
      %p126 = scmp.eq.s32.totalorder %s23, 0
      %p127 = por %p125, %p126
      %s129 = sadd.s32 %s128, 1
      %p132 = scmp.eq.s32.totalorder %s17, 7
      %p133 = scmp.ne.s32.totalorder %s128, %s130
      %p134 = scmp.eq.s32.totalorder %s17, 0
      %p135 = por %p133, %p134
      %p136 = scmp.ne.s32.totalorder %s128, %s130
      %p137 = scmp.eq.s32.totalorder %s22, 7
      %p138 = por %p136, %p137
      %p139 = scmp.ne.s32.totalorder %s130, %s131
      %p140 = scmp.eq.s32.totalorder %s22, 0
      %p141 = por %p139, %p140
      %p142 = scmp.ne.s32.totalorder %s130, %s131
      %p143 = scmp.eq.s32.totalorder %s23, 7
      %p144 = por %p142, %p143
      %p146 = scmp.ne.s32.totalorder %s131, %s145
      %p147 = scmp.eq.s32.totalorder %s23, 0
      %p148 = por %p146, %p147
      %s150 = sadd.s32 %s149, 1
      %p153 = scmp.eq.s32.totalorder %s17, 7
      %p154 = scmp.ne.s32.totalorder %s149, %s151
      %p155 = scmp.eq.s32.totalorder %s17, 0
      %p156 = por %p154, %p155
      %p157 = scmp.ne.s32.totalorder %s149, %s151
      %p158 = scmp.eq.s32.totalorder %s22, 7
      %p159 = por %p157, %p158
      %p160 = scmp.ne.s32.totalorder %s151, %s152
      %p161 = scmp.eq.s32.totalorder %s22, 0
      %p162 = por %p160, %p161
      %p163 = scmp.ne.s32.totalorder %s151, %s152
      %p164 = scmp.eq.s32.totalorder %s23, 7
      %p165 = por %p163, %p164
      %p167 = scmp.ne.s32.totalorder %s152, %s166
      %p168 = scmp.eq.s32.totalorder %s23, 0
      %p169 = por %p167, %p168
      %s171 = sadd.s32 %s170, 1
      %p174 = scmp.eq.s32.totalorder %s17, 7
      %p175 = scmp.ne.s32.totalorder %s170, %s172
      %p176 = scmp.eq.s32.totalorder %s17, 0
      %p177 = por %p175, %p176
      %p178 = scmp.ne.s32.totalorder %s170, %s172
      %p179 = scmp.eq.s32.totalorder %s22, 7
      %p180 = por %p178, %p179
      %p181 = scmp.ne.s32.totalorder %s172, %s173
      %p182 = scmp.eq.s32.totalorder %s22, 0
      %p183 = por %p181, %p182
      %p184 = scmp.ne.s32.totalorder %s172, %s173
      %p185 = scmp.eq.s32.totalorder %s23, 7
      %p186 = por %p184, %p185
      %p188 = scmp.ne.s32.totalorder %s173, %s187
      %p189 = scmp.eq.s32.totalorder %s23, 0
      %p190 = por %p188, %p189
      %s192 = sadd.s32 %s191, 1
      %p195 = scmp.eq.s32.totalorder %s17, 7
      %p196 = scmp.ne.s32.totalorder %s191, %s193
      %p197 = scmp.eq.s32.totalorder %s17, 0
      %p198 = por %p196, %p197
      %p199 = scmp.ne.s32.totalorder %s191, %s193
      %p200 = scmp.eq.s32.totalorder %s22, 7
      %p201 = por %p199, %p200
      %p202 = scmp.ne.s32.totalorder %s193, %s194
      %p203 = scmp.eq.s32.totalorder %s22, 0
      %p204 = por %p202, %p203
      %p205 = scmp.ne.s32.totalorder %s193, %s194
      %p206 = scmp.eq.s32.totalorder %s23, 7
      %p207 = por %p205, %p206
      %p209 = scmp.ne.s32.totalorder %s194, %s208
      %p210 = scmp.eq.s32.totalorder %s23, 0
      %p211 = por %p209, %p210
      %s212 = ssub.s32 %s24, %s36
      %p213 = scmp.eq.s32.totalorder %s212, 0
      %s215 = sadd.s32 %s214, 1
      %s216 = scalar_select %p213, %s214, %s215
      %p219 = pneg %p213
      %p220 = scmp.eq.s32.totalorder %s17, 7
      %p221 = por %p219, %p220
      %p222 = scmp.ne.s32.totalorder %s214, %s217
      %p223 = scmp.eq.s32.totalorder %s17, 0
      %p224 = por %p222, %p223
      %p225 = scmp.ne.s32.totalorder %s214, %s217
      %p226 = scmp.eq.s32.totalorder %s22, 7
      %p227 = por %p225, %p226
      %p228 = scmp.ne.s32.totalorder %s217, %s218
      %p229 = scmp.eq.s32.totalorder %s22, 0
      %p230 = por %p228, %p229
      %p231 = scmp.ne.s32.totalorder %s217, %s218
      %p232 = scmp.eq.s32.totalorder %s23, 7
      %p233 = por %p231, %p232
      %p235 = scmp.ne.s32.totalorder %s218, %s234
      %p236 = scmp.eq.s32.totalorder %s23, 0
      %p237 = por %p235, %p236
      %p238 = scmp.le.s32.totalorder 1, %s17
      %p239 = scmp.lt.s32.totalorder %s17, 9
      %p240 = pnand %p238, %p239
      %p241 = pneg %p240
      // Predicated region
      $region9: #{tpu_custom_call.1} parent=5 // pred_check
        _
      $region10: #{tpu_custom_call.1} parent=5 // pred_check_branch
        %243 = sbr.rel (%p240) target = $region12
      $region11: #{tpu_custom_call.1} parent=5 // pred_region
        %s244 = ssub.s32 %s17, 1
        // Predicated region
        $region13: #{tpu_custom_call.1} parent=11 // pred_check
          %p245 = pneg %p78
        $region14: #{tpu_custom_call.1} parent=11 // pred_check_branch
          %247 = sbr.rel (%p245) target = $region16
        $region15: #{tpu_custom_call.1} parent=11 // pred_region
          _
        $region16: #{tpu_custom_call.1} parent=11 // pred_fallthru
          _
        // Predicated region
        $region17: #{tpu_custom_call.1} parent=11 // pred_check
          %p248 = pneg %p99
        $region18: #{tpu_custom_call.1} parent=11 // pred_check_branch
          %250 = sbr.rel (%p248) target = $region20
        $region19: #{tpu_custom_call.1} parent=11 // pred_region
          _
        $region20: #{tpu_custom_call.1} parent=11 // pred_fallthru
          _
        // Predicated region
        $region21: #{tpu_custom_call.1} parent=11 // pred_check
          %p251 = pneg %p120
        $region22: #{tpu_custom_call.1} parent=11 // pred_check_branch
          %253 = sbr.rel (%p251) target = $region24
        $region23: #{tpu_custom_call.1} parent=11 // pred_region
          _
        $region24: #{tpu_custom_call.1} parent=11 // pred_fallthru
          _
        // Predicated region
        $region25: #{tpu_custom_call.1} parent=11 // pred_check
          %p254 = pneg %p141
        $region26: #{tpu_custom_call.1} parent=11 // pred_check_branch
          %256 = sbr.rel (%p254) target = $region28
        $region27: #{tpu_custom_call.1} parent=11 // pred_region
          _
        $region28: #{tpu_custom_call.1} parent=11 // pred_fallthru
          _
        // Predicated region
        $region29: #{tpu_custom_call.1} parent=11 // pred_check
          %p257 = pneg %p162
        $region30: #{tpu_custom_call.1} parent=11 // pred_check_branch
          %259 = sbr.rel (%p257) target = $region32
        $region31: #{tpu_custom_call.1} parent=11 // pred_region
          _
        $region32: #{tpu_custom_call.1} parent=11 // pred_fallthru
          _
        // Predicated region
        $region33: #{tpu_custom_call.1} parent=11 // pred_check
          %p260 = pneg %p183
        $region34: #{tpu_custom_call.1} parent=11 // pred_check_branch
          %262 = sbr.rel (%p260) target = $region36
        $region35: #{tpu_custom_call.1} parent=11 // pred_region
          _
        $region36: #{tpu_custom_call.1} parent=11 // pred_fallthru
          _
        // Predicated region
        $region37: #{tpu_custom_call.1} parent=11 // pred_check
          %p263 = pneg %p204
        $region38: #{tpu_custom_call.1} parent=11 // pred_check_branch
          %265 = sbr.rel (%p263) target = $region40
        $region39: #{tpu_custom_call.1} parent=11 // pred_region
          _
        $region40: #{tpu_custom_call.1} parent=11 // pred_fallthru
          _
      $region12: #{tpu_custom_call.1} parent=5 // pred_fallthru
        _
      %p266 = scmp.lt.s32.totalorder %s17, 8
      // Predicated region
      $region41: #{tpu_custom_call.1} parent=5 // pred_check
        %p267 = pneg %p266
      $region42: #{tpu_custom_call.1} parent=5 // pred_check_branch
        %269 = sbr.rel (%p267) target = $region44
      $region43: #{tpu_custom_call.1} parent=5 // pred_region
        // Predicated region
        $region45: #{tpu_custom_call.1} parent=43 // pred_check
          %p270 = pneg %p51
        $region46: #{tpu_custom_call.1} parent=43 // pred_check_branch
          %272 = sbr.rel (%p270) target = $region48
        $region47: #{tpu_custom_call.1} parent=43 // pred_region
          %s273 = sand.u32 %s41, 1
          %s274 = sand.u32 %s41, 1
          %s275 = smul.addr %s274, 128
          %s276 = scalar_lea.vmem [#allocation3], %s275
          %s277 = smul.u32 16, %s25
          %s278 = smul.addr %s277, 2
          %s279 = sadd.s32 %s24, %s278
          %s280 = smul.addr %s279, 8
          %s281 = scalar_lea.vmem %s0, %s280
          // Predicated region
          $region49: #{tpu_custom_call.1} parent=47 // pred_check
            _
          $region50: #{tpu_custom_call.1} parent=47 // pred_check_branch
            %283 = sbr.rel (0) target = $region52
          $region51: #{tpu_custom_call.1} parent=47 // pred_region
            // Predicated region
            $region53: #{tpu_custom_call.1} parent=51 // pred_check
              _
            $region54: #{tpu_custom_call.1} parent=51 // pred_check_branch
              %285 = sbr.rel (0) target = $region56
            $region55: #{tpu_custom_call.1} parent=51 // pred_region
              // Predicated region
              $region68: #{tpu_custom_call.1} parent=55 // pred_check
                _
              $region69: #{tpu_custom_call.1} parent=55 // pred_check_branch
                %331 = sbr.rel (0) target = $region71
              $region70: #{tpu_custom_call.1} parent=55 // pred_region
                loop: start=0, step=1, limit=1
                $region72: #{tpu_custom_call.1} parent=70 // loop_pre_header
                  _
                $region73: #{tpu_custom_call.1} parent=70 // loop_header
                  %s333 = sphi 0, %s337
                  %p334 = scmp.ge.s32.totalorder %s333, 1
                  %s338 = sphi %s281, %s281
                  %s339 = sphi %s276, %s276
                $region74: #{tpu_custom_call.1} parent=70 // loop_header_branch
                  %336 = sbr.rel (%p334) target = $region78
                $region75: #{tpu_custom_call.1} parent=70 // loop_body
                  %v340 = vld [vmem:[%s338] sm:$0xff]
                  %341 = vst [vmem:[%s339] sm:$0xff] %v340
                  %v342 = vld [vmem:[%s338 + $0x10] sm:$0xff]
                  %343 = vst [vmem:[%s339 + $0x8] sm:$0xff] %v342
                  %v344 = vld [vmem:[%s338 + $0x20] sm:$0xff]
                  %345 = vst [vmem:[%s339 + $0x10] sm:$0xff] %v344
                  %v346 = vld [vmem:[%s338 + $0x30] sm:$0xff]
                  %347 = vst [vmem:[%s339 + $0x18] sm:$0xff] %v346
                  %v348 = vld [vmem:[%s338 + $0x40] sm:$0xff]
                  %349 = vst [vmem:[%s339 + $0x20] sm:$0xff] %v348
                  %v350 = vld [vmem:[%s338 + $0x50] sm:$0xff]
                  %351 = vst [vmem:[%s339 + $0x28] sm:$0xff] %v350
                  %v352 = vld [vmem:[%s338 + $0x60] sm:$0xff]
                  %353 = vst [vmem:[%s339 + $0x30] sm:$0xff] %v352
                  %v354 = vld [vmem:[%s338 + $0x70] sm:$0xff]
                  %355 = vst [vmem:[%s339 + $0x38] sm:$0xff] %v354
                  %v356 = vld [vmem:[%s338 + $0x80] sm:$0xff]
                  %357 = vst [vmem:[%s339 + $0x40] sm:$0xff] %v356
                  %v358 = vld [vmem:[%s338 + $0x90] sm:$0xff]
                  %359 = vst [vmem:[%s339 + $0x48] sm:$0xff] %v358
                  %v360 = vld [vmem:[%s338 + $0xa0] sm:$0xff]
                  %361 = vst [vmem:[%s339 + $0x50] sm:$0xff] %v360
                  %v362 = vld [vmem:[%s338 + $0xb0] sm:$0xff]
                  %363 = vst [vmem:[%s339 + $0x58] sm:$0xff] %v362
                  %v364 = vld [vmem:[%s338 + $0xc0] sm:$0xff]
                  %365 = vst [vmem:[%s339 + $0x60] sm:$0xff] %v364
                  %v366 = vld [vmem:[%s338 + $0xd0] sm:$0xff]
                  %367 = vst [vmem:[%s339 + $0x68] sm:$0xff] %v366
                  %v368 = vld [vmem:[%s338 + $0xe0] sm:$0xff]
                  %369 = vst [vmem:[%s339 + $0x70] sm:$0xff] %v368
                  %v370 = vld [vmem:[%s338 + $0xf0] sm:$0xff]
                  %371 = vst [vmem:[%s339 + $0x78] sm:$0xff] %v370
                $region76: #{tpu_custom_call.1} parent=70 // loop_footer
                  %s337 = sadd.s32 1, %s333
                $region77: #{tpu_custom_call.1} parent=70 // loop_footer_branch
                  %332 = sbr.rel target = $region73
                $region78: #{tpu_custom_call.1} parent=70 // loop_exit
                  _
              $region71: #{tpu_custom_call.1} parent=55 // pred_fallthru
                _
              // Predicated region
              $region79: #{tpu_custom_call.1} parent=55 // pred_check
                _
              $region80: #{tpu_custom_call.1} parent=55 // pred_check_branch
                %373 = sbr.rel target = $region82
              $region81: #{tpu_custom_call.1} parent=55 // pred_region
                _
              $region82: #{tpu_custom_call.1} parent=55 // pred_fallthru
                _
            $region56: #{tpu_custom_call.1} parent=51 // pred_fallthru
              _
            // Predicated region
            $region57: #{tpu_custom_call.1} parent=51 // pred_check
              _
            $region58: #{tpu_custom_call.1} parent=51 // pred_check_branch
              %287 = sbr.rel target = $region60
            $region59: #{tpu_custom_call.1} parent=51 // pred_region
              %s289 = ssub.s32 256, 1
              loop: start=0, step=1, limit=1
              $region61: #{tpu_custom_call.1} parent=59 // loop_pre_header
                _
              $region62: #{tpu_custom_call.1} parent=59 // loop_header
                %s291 = sphi 0, %s295
                %p292 = scmp.ge.s32.totalorder %s291, 1
                %s296 = sphi %s281, %s281
                %s297 = sphi %s276, %s276
              $region63: #{tpu_custom_call.1} parent=59 // loop_header_branch
                %294 = sbr.rel (%p292) target = $region67
              $region64: #{tpu_custom_call.1} parent=59 // loop_body
                %v298 = vld [vmem:[%s296] sm:%s289]
                %299 = vst [vmem:[%s297] sm:%s289] %v298
                %v300 = vld [vmem:[%s296 + $0x10] sm:%s289]
                %301 = vst [vmem:[%s297 + $0x8] sm:%s289] %v300
                %v302 = vld [vmem:[%s296 + $0x20] sm:%s289]
                %303 = vst [vmem:[%s297 + $0x10] sm:%s289] %v302
                %v304 = vld [vmem:[%s296 + $0x30] sm:%s289]
                %305 = vst [vmem:[%s297 + $0x18] sm:%s289] %v304
                %v306 = vld [vmem:[%s296 + $0x40] sm:%s289]
                %307 = vst [vmem:[%s297 + $0x20] sm:%s289] %v306
                %v308 = vld [vmem:[%s296 + $0x50] sm:%s289]
                %309 = vst [vmem:[%s297 + $0x28] sm:%s289] %v308
                %v310 = vld [vmem:[%s296 + $0x60] sm:%s289]
                %311 = vst [vmem:[%s297 + $0x30] sm:%s289] %v310
                %v312 = vld [vmem:[%s296 + $0x70] sm:%s289]
                %313 = vst [vmem:[%s297 + $0x38] sm:%s289] %v312
                %v314 = vld [vmem:[%s296 + $0x80] sm:%s289]
                %315 = vst [vmem:[%s297 + $0x40] sm:%s289] %v314
                %v316 = vld [vmem:[%s296 + $0x90] sm:%s289]
                %317 = vst [vmem:[%s297 + $0x48] sm:%s289] %v316
                %v318 = vld [vmem:[%s296 + $0xa0] sm:%s289]
                %319 = vst [vmem:[%s297 + $0x50] sm:%s289] %v318
                %v320 = vld [vmem:[%s296 + $0xb0] sm:%s289]
                %321 = vst [vmem:[%s297 + $0x58] sm:%s289] %v320
                %v322 = vld [vmem:[%s296 + $0xc0] sm:%s289]
                %323 = vst [vmem:[%s297 + $0x60] sm:%s289] %v322
                %v324 = vld [vmem:[%s296 + $0xd0] sm:%s289]
                %325 = vst [vmem:[%s297 + $0x68] sm:%s289] %v324
                %v326 = vld [vmem:[%s296 + $0xe0] sm:%s289]
                %327 = vst [vmem:[%s297 + $0x70] sm:%s289] %v326
                %v328 = vld [vmem:[%s296 + $0xf0] sm:%s289]
                %329 = vst [vmem:[%s297 + $0x78] sm:%s289] %v328
              $region65: #{tpu_custom_call.1} parent=59 // loop_footer
                %s295 = sadd.s32 1, %s291
              $region66: #{tpu_custom_call.1} parent=59 // loop_footer_branch
                %290 = sbr.rel target = $region62
              $region67: #{tpu_custom_call.1} parent=59 // loop_exit
                _
            $region60: #{tpu_custom_call.1} parent=51 // pred_fallthru
              _
          $region52: #{tpu_custom_call.1} parent=47 // pred_fallthru
            _
          %374 = vnop
        $region48: #{tpu_custom_call.1} parent=43 // pred_fallthru
          _
      $region44: #{tpu_custom_call.1} parent=5 // pred_fallthru
        _
      %p375 = scmp.le.s32.totalorder 1, %s17
      %p376 = scmp.lt.s32.totalorder %s17, 9
      %p377 = pnand %p375, %p376
      %p378 = pneg %p377
      // Predicated region
      $region83: #{tpu_custom_call.1} parent=5 // pred_check
        _
      $region84: #{tpu_custom_call.1} parent=5 // pred_check_branch
        %380 = sbr.rel (%p377) target = $region86
      $region85: #{tpu_custom_call.1} parent=5 // pred_region
        %s381 = ssub.s32 %s17, 1
        %s382 = sand.u32 %s44, 1
        %s383 = sand.u32 %s44, 1
        %s384 = smul.addr %s383, 128
        %s385 = scalar_lea.vmem [#allocation3], %s384
        // Predicated region
        $region87: #{tpu_custom_call.1} parent=85 // pred_check
          %p386 = pneg %p57
        $region88: #{tpu_custom_call.1} parent=85 // pred_check_branch
          %388 = sbr.rel (%p386) target = $region90
        $region89: #{tpu_custom_call.1} parent=85 // pred_region
          _
        $region90: #{tpu_custom_call.1} parent=85 // pred_fallthru
          _
        %s389 = sand.u32 %s44, 1
        %s390 = sand.u32 %s44, 1
        %s391 = smul.addr %s390, 128
        %s392 = scalar_lea.vmem [#allocation3], %s391
        %p393 = pneg %p57
        %p394 = pneg %p54
        %p395 = pneg %p78
        %p396 = pneg %p75
        %p397 = pneg %p99
        %p398 = pneg %p96
        %p399 = pneg %p120
        %p400 = pneg %p117
        %p401 = pneg %p141
        %p402 = pneg %p138
        %p403 = pneg %p162
        %p404 = pneg %p159
        %p405 = pneg %p183
        %p406 = pneg %p180
        %p407 = pneg %p204
        %p408 = pneg %p201
        %p409 = pneg %p230
        %p410 = pneg %p227
        %s411 = sand.u32 %s217, 1
        %s412 = scalar_lea.sflag [#allocation5], %s411
        %s413 = sand.u32 %s217, 1
        %s414 = smul.addr %s413, 8
        %s415 = scalar_lea.vmem [#allocation4], %s414
        %s416 = smul.u32 16, %s27
        %p417 = scmp.eq.s32.totalorder %s27, 0
        // Predicated region
        $region91: #{tpu_custom_call.1} parent=85 // pred_check
          %p418 = pneg %p417
        $region92: #{tpu_custom_call.1} parent=85 // pred_check_branch
          %420 = sbr.rel (%p418) target = $region94
        $region93: #{tpu_custom_call.1} parent=85 // pred_region
          %421 = vst [vmem:[#allocation2] sm:$0xff] 0.0
        $region94: #{tpu_custom_call.1} parent=85 // pred_fallthru
          _
        %v422 = vld [vmem:[%s385] sm:$0xff]
        %v423 = vld [vmem:[%s385 + $0x8] sm:$0xff]
        %v424 = vld [vmem:[%s385 + $0x10] sm:$0xff]
        %v425 = vld [vmem:[%s385 + $0x18] sm:$0xff]
        %v426 = vld [vmem:[%s385 + $0x20] sm:$0xff]
        %v427 = vld [vmem:[%s385 + $0x28] sm:$0xff]
        %v428 = vld [vmem:[%s385 + $0x30] sm:$0xff]
        %v429 = vld [vmem:[%s385 + $0x38] sm:$0xff]
        %v430 = vld [vmem:[%s385 + $0x40] sm:$0xff]
        %v431 = vld [vmem:[%s385 + $0x48] sm:$0xff]
        %v432 = vld [vmem:[%s385 + $0x50] sm:$0xff]
        %v433 = vld [vmem:[%s385 + $0x58] sm:$0xff]
        %v434 = vld [vmem:[%s385 + $0x60] sm:$0xff]
        %v435 = vld [vmem:[%s385 + $0x68] sm:$0xff]
        %v436 = vld [vmem:[%s385 + $0x70] sm:$0xff]
        %v437 = vld [vmem:[%s385 + $0x78] sm:$0xff]
        %v438 = vlaneseq
        %v439 = vand.u32 %v438, 127
        %440 = vset.pattern.permute.xlu0 0
        %441 = vperm.xlu0 %440, %v422
        %v442 = vpop.permute.xlu0 %441
        %443 = vset.pattern.permute.xlu0 0
        %444 = vperm.xlu0 %443, %v423
        %v445 = vpop.permute.xlu0 %444
        %446 = vset.pattern.permute.xlu0 0
        %447 = vperm.xlu0 %446, %v424
        %v448 = vpop.permute.xlu0 %447
        %449 = vset.pattern.permute.xlu0 0
        %450 = vperm.xlu0 %449, %v425
        %v451 = vpop.permute.xlu0 %450
        %452 = vset.pattern.permute.xlu0 0
        %453 = vperm.xlu0 %452, %v426
        %v454 = vpop.permute.xlu0 %453
        %455 = vset.pattern.permute.xlu0 0
        %456 = vperm.xlu0 %455, %v427
        %v457 = vpop.permute.xlu0 %456
        %458 = vset.pattern.permute.xlu0 0
        %459 = vperm.xlu0 %458, %v428
        %v460 = vpop.permute.xlu0 %459
        %461 = vset.pattern.permute.xlu0 0
        %462 = vperm.xlu0 %461, %v429
        %v463 = vpop.permute.xlu0 %462
        %464 = vset.pattern.permute.xlu0 0
        %465 = vperm.xlu0 %464, %v430
        %v466 = vpop.permute.xlu0 %465
        %467 = vset.pattern.permute.xlu0 0
        %468 = vperm.xlu0 %467, %v431
        %v469 = vpop.permute.xlu0 %468
        %470 = vset.pattern.permute.xlu0 0
        %471 = vperm.xlu0 %470, %v432
        %v472 = vpop.permute.xlu0 %471
        %473 = vset.pattern.permute.xlu0 0
        %474 = vperm.xlu0 %473, %v433
        %v475 = vpop.permute.xlu0 %474
        %476 = vset.pattern.permute.xlu0 0
        %477 = vperm.xlu0 %476, %v434
        %v478 = vpop.permute.xlu0 %477
        %479 = vset.pattern.permute.xlu0 0
        %480 = vperm.xlu0 %479, %v435
        %v481 = vpop.permute.xlu0 %480
        %482 = vset.pattern.permute.xlu0 0
        %483 = vperm.xlu0 %482, %v436
        %v484 = vpop.permute.xlu0 %483
        %485 = vset.pattern.permute.xlu0 0
        %486 = vperm.xlu0 %485, %v437
        %v487 = vpop.permute.xlu0 %486
        %vm488 = vcmp.eq.s32.totalorder %v442, %v439
        %vm489 = vcmp.eq.s32.totalorder %v445, %v439
        %vm490 = vcmp.eq.s32.totalorder %v448, %v439
        %vm491 = vcmp.eq.s32.totalorder %v451, %v439
        %vm492 = vcmp.eq.s32.totalorder %v454, %v439
        %vm493 = vcmp.eq.s32.totalorder %v457, %v439
        %vm494 = vcmp.eq.s32.totalorder %v460, %v439
        %vm495 = vcmp.eq.s32.totalorder %v463, %v439
        %vm496 = vcmp.eq.s32.totalorder %v466, %v439
        %vm497 = vcmp.eq.s32.totalorder %v469, %v439
        %vm498 = vcmp.eq.s32.totalorder %v472, %v439
        %vm499 = vcmp.eq.s32.totalorder %v475, %v439
        %vm500 = vcmp.eq.s32.totalorder %v478, %v439
        %vm501 = vcmp.eq.s32.totalorder %v481, %v439
        %vm502 = vcmp.eq.s32.totalorder %v484, %v439
        %vm503 = vcmp.eq.s32.totalorder %v487, %v439
        %v504 = vsel %vm488, 1, 0
        %v505 = vsel %vm489, 1, 0
        %v506 = vsel %vm490, 1, 0
        %v507 = vsel %vm491, 1, 0
        %v508 = vsel %vm492, 1, 0
        %v509 = vsel %vm493, 1, 0
        %v510 = vsel %vm494, 1, 0
        %v511 = vsel %vm495, 1, 0
        %v512 = vsel %vm496, 1, 0
        %v513 = vsel %vm497, 1, 0
        %v514 = vsel %vm498, 1, 0
        %v515 = vsel %vm499, 1, 0
        %v516 = vsel %vm500, 1, 0
        %v517 = vsel %vm501, 1, 0
        %v518 = vsel %vm502, 1, 0
        %v519 = vsel %vm503, 1, 0
        %v520 = vcvt.s32.f32 %v504
        %v521 = vcvt.s32.f32 %v505
        %v522 = vcvt.s32.f32 %v506
        %v523 = vcvt.s32.f32 %v507
        %v524 = vcvt.s32.f32 %v508
        %v525 = vcvt.s32.f32 %v509
        %v526 = vcvt.s32.f32 %v510
        %v527 = vcvt.s32.f32 %v511
        %v528 = vcvt.s32.f32 %v512
        %v529 = vcvt.s32.f32 %v513
        %v530 = vcvt.s32.f32 %v514
        %v531 = vcvt.s32.f32 %v515
        %v532 = vcvt.s32.f32 %v516
        %v533 = vcvt.s32.f32 %v517
        %v534 = vcvt.s32.f32 %v518
        %v535 = vcvt.s32.f32 %v519
        %v536 = vld [vmem:[#allocation2] sm:$0xff]
        %v537 = vadd.f32 %v520, %v521
        %v538 = vadd.f32 %v537, %v522
        %v539 = vadd.f32 %v538, %v523
        %v540 = vadd.f32 %v539, %v524
        %v541 = vadd.f32 %v540, %v525
        %v542 = vadd.f32 %v541, %v526
        %v543 = vadd.f32 %v542, %v527
        %v544 = vadd.f32 %v543, %v528
        %v545 = vadd.f32 %v544, %v529
        %v546 = vadd.f32 %v545, %v530
        %v547 = vadd.f32 %v546, %v531
        %v548 = vadd.f32 %v547, %v532
        %v549 = vadd.f32 %v548, %v533
        %v550 = vadd.f32 %v549, %v534
        %v551 = vadd.f32 %v550, %v535
        %v552 = vadd.f32 %v536, %v551
        %553 = vst [vmem:[#allocation2] sm:$0xff] %v552
        %p554 = scmp.eq.s32.totalorder %s27, 3
        // Predicated region
        $region95: #{tpu_custom_call.1} parent=85 // pred_check
          %p555 = pneg %p554
        $region96: #{tpu_custom_call.1} parent=85 // pred_check_branch
          %557 = sbr.rel (%p555) target = $region98
        $region97: #{tpu_custom_call.1} parent=85 // pred_region
          %v558 = vld [vmem:[#allocation2] sm:$0xff]
          %v559 = vld [vmem:[%s1] sm:$0xff]
          %v560 = vld [vmem:[%s1 + $0x8] sm:$0xff]
          %v561 = vld [vmem:[%s1 + $0x10] sm:$0xff]
          %v562 = vld [vmem:[%s1 + $0x18] sm:$0xff]
          %v563 = vld [vmem:[%s1 + $0x20] sm:$0xff]
          %v564 = vld [vmem:[%s1 + $0x28] sm:$0xff]
          %v565 = vld [vmem:[%s1 + $0x30] sm:$0xff]
          %v566 = vld [vmem:[%s1 + $0x38] sm:$0xff]
          %v567 = vld [vmem:[%s1 + $0x40] sm:$0xff]
          %v568 = vld [vmem:[%s1 + $0x48] sm:$0xff]
          %v569 = vld [vmem:[%s1 + $0x50] sm:$0xff]
          %v570 = vld [vmem:[%s1 + $0x58] sm:$0xff]
          %v571 = vld [vmem:[%s1 + $0x60] sm:$0xff]
          %v572 = vld [vmem:[%s1 + $0x68] sm:$0xff]
          %v573 = vld [vmem:[%s1 + $0x70] sm:$0xff]
          %v574 = vld [vmem:[%s1 + $0x78] sm:$0xff]
          %575 = vmatprep.subr.mxu0 0.0
          %576 = vmatpush1.msra.mxu0 %v574
          %577 = vmatprep.subr.mxu0 0.0
          %578 = vmatpush1.msra.mxu0 %v573
          %579 = vmatprep.subr.mxu0 0.0
          %580 = vmatpush1.msra.mxu0 %v572
          %581 = vmatprep.subr.mxu0 0.0
          %582 = vmatpush1.msra.mxu0 %v571
          %583 = vmatprep.subr.mxu0 0.0
          %584 = vmatpush1.msra.mxu0 %v570
          %585 = vmatprep.subr.mxu0 0.0
          %586 = vmatpush1.msra.mxu0 %v569
          %587 = vmatprep.subr.mxu0 0.0
          %588 = vmatpush1.msra.mxu0 %v568
          %589 = vmatprep.subr.mxu0 0.0
          %590 = vmatpush1.msra.mxu0 %v567
          %591 = vmatprep.subr.mxu0 0.0
          %592 = vmatpush1.msra.mxu0 %v566
          %593 = vmatprep.subr.mxu0 0.0
          %594 = vmatpush1.msra.mxu0 %v565
          %595 = vmatprep.subr.mxu0 0.0
          %596 = vmatpush1.msra.mxu0 %v564
          %597 = vmatprep.subr.mxu0 0.0
          %598 = vmatpush1.msra.mxu0 %v563
          %599 = vmatprep.subr.mxu0 0.0
          %600 = vmatpush1.msra.mxu0 %v562
          %601 = vmatprep.subr.mxu0 0.0
          %602 = vmatpush1.msra.mxu0 %v561
          %603 = vmatprep.subr.mxu0 0.0
          %604 = vmatpush1.msra.mxu0 %v560
          %605 = vmatprep.subr.mxu0 0.0
          %606 = vmatpush1.msra.mxu0 %v559
          %607 = vmatprep.subr.mxu0 0.0
          %608 = vmatpush2.msra.mxu0 0.0
          %609 = vmatprep.subr.mxu0 0.0
          %610 = vmatpush2.msra.mxu0 0.0
          %611 = vmatprep.subr.mxu0 0.0
          %612 = vmatpush2.msra.mxu0 0.0
          %613 = vmatprep.subr.mxu0 0.0
          %614 = vmatpush2.msra.mxu0 0.0
          %615 = vmatprep.subr.mxu0 0.0
          %616 = vmatpush2.msra.mxu0 0.0
          %617 = vmatprep.subr.mxu0 0.0
          %618 = vmatpush2.msra.mxu0 0.0
          %619 = vmatprep.subr.mxu0 0.0
          %620 = vmatpush2.msra.mxu0 0.0
          %621 = vmatprep.subr.mxu0 0.0
          %622 = vmatpush2.msra.mxu0 0.0
          %623 = vmatprep.subr.mxu0 0.0
          %624 = vmatpush2.msra.mxu0 0.0
          %625 = vmatprep.subr.mxu0 0.0
          %626 = vmatpush2.msra.mxu0 0.0
          %627 = vmatprep.subr.mxu0 0.0
          %628 = vmatpush2.msra.mxu0 0.0
          %629 = vmatprep.subr.mxu0 0.0
          %630 = vmatpush2.msra.mxu0 0.0
          %631 = vmatprep.subr.mxu0 0.0
          %632 = vmatpush2.msra.mxu0 0.0
          %633 = vmatprep.subr.mxu0 0.0
          %634 = vmatpush2.msra.mxu0 0.0
          %635 = vmatprep.subr.mxu0 0.0
          %636 = vmatpush2.msra.mxu0 0.0
          %637 = vmatprep.subr.mxu0 0.0
          %638 = vmatpush2.msra.mxu0 0.0
          %639 = vmatprep.mubr.f32.mxu0 0.0
          %640 = vmatmul.mubr.f32.gmra.mxu0 %v558
          %v641 = vpop.f32.mrf.mxu0
          %v642 = vadd.f32 0.0, %v641
          %v643 = vpop.f32.mrf.mxu0
          %644 = vdwg.mxu0
          %v645 = vmul.f32 %v642, 0.015625
          %v646 = vld [vmem:[%s2] sm:$0xff]
          %v647 = vld [vmem:[%s2 + $0x8] sm:$0xff]
          %v648 = vld [vmem:[%s2 + $0x10] sm:$0xff]
          %v649 = vld [vmem:[%s2 + $0x18] sm:$0xff]
          %v650 = vld [vmem:[%s2 + $0x20] sm:$0xff]
          %v651 = vld [vmem:[%s2 + $0x28] sm:$0xff]
          %v652 = vld [vmem:[%s2 + $0x30] sm:$0xff]
          %v653 = vld [vmem:[%s2 + $0x38] sm:$0xff]
          %v654 = vld [vmem:[%s2 + $0x40] sm:$0xff]
          %v655 = vld [vmem:[%s2 + $0x48] sm:$0xff]
          %v656 = vld [vmem:[%s2 + $0x50] sm:$0xff]
          %v657 = vld [vmem:[%s2 + $0x58] sm:$0xff]
          %v658 = vld [vmem:[%s2 + $0x60] sm:$0xff]
          %v659 = vld [vmem:[%s2 + $0x68] sm:$0xff]
          %v660 = vld [vmem:[%s2 + $0x70] sm:$0xff]
          %v661 = vld [vmem:[%s2 + $0x78] sm:$0xff]
          %v662 = vld [vmem:[%s3] sm:$0x1]
          %v664 = vlaneseq
          %v665 = vshrl.u32 %v664, 7
          %v666 = vsub.s32 0, %v665
          %v667 = vrot.slane %v662, %v666
          %669 = vmatprep.subr.mxu0 0.0
          %670 = vmatpush1.msra.mxu0 %v661
          %671 = vmatprep.subr.mxu0 0.0
          %672 = vmatpush1.msra.mxu0 %v660
          %673 = vmatprep.subr.mxu0 0.0
          %674 = vmatpush1.msra.mxu0 %v659
          %675 = vmatprep.subr.mxu0 0.0
          %676 = vmatpush1.msra.mxu0 %v658
          %677 = vmatprep.subr.mxu0 0.0
          %678 = vmatpush1.msra.mxu0 %v657
          %679 = vmatprep.subr.mxu0 0.0
          %680 = vmatpush1.msra.mxu0 %v656
          %681 = vmatprep.subr.mxu0 0.0
          %682 = vmatpush1.msra.mxu0 %v655
          %683 = vmatprep.subr.mxu0 0.0
          %684 = vmatpush1.msra.mxu0 %v654
          %685 = vmatprep.subr.mxu0 0.0
          %686 = vmatpush1.msra.mxu0 %v653
          %687 = vmatprep.subr.mxu0 0.0
          %688 = vmatpush1.msra.mxu0 %v652
          %689 = vmatprep.subr.mxu0 0.0
          %690 = vmatpush1.msra.mxu0 %v651
          %691 = vmatprep.subr.mxu0 0.0
          %692 = vmatpush1.msra.mxu0 %v650
          %693 = vmatprep.subr.mxu0 0.0
          %694 = vmatpush1.msra.mxu0 %v649
          %695 = vmatprep.subr.mxu0 0.0
          %696 = vmatpush1.msra.mxu0 %v648
          %697 = vmatprep.subr.mxu0 0.0
          %698 = vmatpush1.msra.mxu0 %v647
          %699 = vmatprep.subr.mxu0 0.0
          %700 = vmatpush1.msra.mxu0 %v646
          %701 = vmatprep.subr.mxu0 0.0
          %702 = vmatpush2.msra.mxu0 0.0
          %703 = vmatprep.subr.mxu0 0.0
          %704 = vmatpush2.msra.mxu0 0.0
          %705 = vmatprep.subr.mxu0 0.0
          %706 = vmatpush2.msra.mxu0 0.0
          %707 = vmatprep.subr.mxu0 0.0
          %708 = vmatpush2.msra.mxu0 0.0
          %709 = vmatprep.subr.mxu0 0.0
          %710 = vmatpush2.msra.mxu0 0.0
          %711 = vmatprep.subr.mxu0 0.0
          %712 = vmatpush2.msra.mxu0 0.0
          %713 = vmatprep.subr.mxu0 0.0
          %714 = vmatpush2.msra.mxu0 0.0
          %715 = vmatprep.subr.mxu0 0.0
          %716 = vmatpush2.msra.mxu0 0.0
          %717 = vmatprep.subr.mxu0 0.0
          %718 = vmatpush2.msra.mxu0 0.0
          %719 = vmatprep.subr.mxu0 0.0
          %720 = vmatpush2.msra.mxu0 0.0
          %721 = vmatprep.subr.mxu0 0.0
          %722 = vmatpush2.msra.mxu0 0.0
          %723 = vmatprep.subr.mxu0 0.0
          %724 = vmatpush2.msra.mxu0 0.0
          %725 = vmatprep.subr.mxu0 0.0
          %726 = vmatpush2.msra.mxu0 0.0
          %727 = vmatprep.subr.mxu0 0.0
          %728 = vmatpush2.msra.mxu0 0.0
          %729 = vmatprep.subr.mxu0 0.0
          %730 = vmatpush2.msra.mxu0 0.0
          %731 = vmatprep.subr.mxu0 0.0
          %732 = vmatpush2.msra.mxu0 0.0
          %733 = vmatprep.mubr.f32.mxu0 0.0
          %734 = vmatmul.mubr.f32.gmra.mxu0 %v645
          %v735 = vpop.f32.mrf.mxu0
          %v736 = vadd.f32 %v667, %v735
          %v737 = vpop.f32.mrf.mxu0
          %738 = vdwg.mxu0
          %vm739 = vcmp.gt.f32.partialorder %v736, 0.0
          %v740 = vmul.f32 %v736, 0.01
          %v741 = vsel %vm739, %v736, %v740
          %v742 = vld [vmem:[%s4] sm:$0xff]
          %v743 = vld [vmem:[%s4 + $0x8] sm:$0xff]
          %v744 = vld [vmem:[%s4 + $0x10] sm:$0xff]
          %v745 = vld [vmem:[%s4 + $0x18] sm:$0xff]
          %v746 = vld [vmem:[%s4 + $0x20] sm:$0xff]
          %v747 = vld [vmem:[%s4 + $0x28] sm:$0xff]
          %v748 = vld [vmem:[%s4 + $0x30] sm:$0xff]
          %v749 = vld [vmem:[%s4 + $0x38] sm:$0xff]
          %v750 = vld [vmem:[%s4 + $0x40] sm:$0xff]
          %v751 = vld [vmem:[%s4 + $0x48] sm:$0xff]
          %v752 = vld [vmem:[%s4 + $0x50] sm:$0xff]
          %v753 = vld [vmem:[%s4 + $0x58] sm:$0xff]
          %v754 = vld [vmem:[%s4 + $0x60] sm:$0xff]
          %v755 = vld [vmem:[%s4 + $0x68] sm:$0xff]
          %v756 = vld [vmem:[%s4 + $0x70] sm:$0xff]
          %v757 = vld [vmem:[%s4 + $0x78] sm:$0xff]
          %v758 = vld [vmem:[%s5] sm:$0x1]
          %v760 = vlaneseq
          %v761 = vshrl.u32 %v760, 7
          %v762 = vsub.s32 0, %v761
          %v763 = vrot.slane %v758, %v762
          %765 = vmatprep.subr.mxu0 0.0
          %766 = vmatpush1.msra.mxu0 %v757
          %767 = vmatprep.subr.mxu0 0.0
          %768 = vmatpush1.msra.mxu0 %v756
          %769 = vmatprep.subr.mxu0 0.0
          %770 = vmatpush1.msra.mxu0 %v755
          %771 = vmatprep.subr.mxu0 0.0
          %772 = vmatpush1.msra.mxu0 %v754
          %773 = vmatprep.subr.mxu0 0.0
          %774 = vmatpush1.msra.mxu0 %v753
          %775 = vmatprep.subr.mxu0 0.0
          %776 = vmatpush1.msra.mxu0 %v752
          %777 = vmatprep.subr.mxu0 0.0
          %778 = vmatpush1.msra.mxu0 %v751
          %779 = vmatprep.subr.mxu0 0.0
          %780 = vmatpush1.msra.mxu0 %v750
          %781 = vmatprep.subr.mxu0 0.0
          %782 = vmatpush1.msra.mxu0 %v749
          %783 = vmatprep.subr.mxu0 0.0
          %784 = vmatpush1.msra.mxu0 %v748
          %785 = vmatprep.subr.mxu0 0.0
          %786 = vmatpush1.msra.mxu0 %v747
          %787 = vmatprep.subr.mxu0 0.0
          %788 = vmatpush1.msra.mxu0 %v746
          %789 = vmatprep.subr.mxu0 0.0
          %790 = vmatpush1.msra.mxu0 %v745
          %791 = vmatprep.subr.mxu0 0.0
          %792 = vmatpush1.msra.mxu0 %v744
          %793 = vmatprep.subr.mxu0 0.0
          %794 = vmatpush1.msra.mxu0 %v743
          %795 = vmatprep.subr.mxu0 0.0
          %796 = vmatpush1.msra.mxu0 %v742
          %797 = vmatprep.subr.mxu0 0.0
          %798 = vmatpush2.msra.mxu0 0.0
          %799 = vmatprep.subr.mxu0 0.0
          %800 = vmatpush2.msra.mxu0 0.0
          %801 = vmatprep.subr.mxu0 0.0
          %802 = vmatpush2.msra.mxu0 0.0
          %803 = vmatprep.subr.mxu0 0.0
          %804 = vmatpush2.msra.mxu0 0.0
          %805 = vmatprep.subr.mxu0 0.0
          %806 = vmatpush2.msra.mxu0 0.0
          %807 = vmatprep.subr.mxu0 0.0
          %808 = vmatpush2.msra.mxu0 0.0
          %809 = vmatprep.subr.mxu0 0.0
          %810 = vmatpush2.msra.mxu0 0.0
          %811 = vmatprep.subr.mxu0 0.0
          %812 = vmatpush2.msra.mxu0 0.0
          %813 = vmatprep.subr.mxu0 0.0
          %814 = vmatpush2.msra.mxu0 0.0
          %815 = vmatprep.subr.mxu0 0.0
          %816 = vmatpush2.msra.mxu0 0.0
          %817 = vmatprep.subr.mxu0 0.0
          %818 = vmatpush2.msra.mxu0 0.0
          %819 = vmatprep.subr.mxu0 0.0
          %820 = vmatpush2.msra.mxu0 0.0
          %821 = vmatprep.subr.mxu0 0.0
          %822 = vmatpush2.msra.mxu0 0.0
          %823 = vmatprep.subr.mxu0 0.0
          %824 = vmatpush2.msra.mxu0 0.0
          %825 = vmatprep.subr.mxu0 0.0
          %826 = vmatpush2.msra.mxu0 0.0
          %827 = vmatprep.subr.mxu0 0.0
          %828 = vmatpush2.msra.mxu0 0.0
          %829 = vmatprep.mubr.f32.mxu0 0.0
          %830 = vmatmul.mubr.f32.gmra.mxu0 %v741
          %v831 = vpop.f32.mrf.mxu0
          %v832 = vadd.f32 %v763, %v831
          %v833 = vpop.f32.mrf.mxu0
          %834 = vdwg.mxu0
          %vm835 = vcmp.gt.f32.partialorder %v832, 0.0
          %v836 = vmul.f32 %v832, 0.01
          %v837 = vsel %vm835, %v832, %v836
          %v838 = vld [vmem:[%s6] sm:$0xff]
          %v839 = vld [vmem:[%s6 + $0x8] sm:$0xff]
          %v840 = vld [vmem:[%s6 + $0x10] sm:$0xff]
          %v841 = vld [vmem:[%s6 + $0x18] sm:$0xff]
          %v842 = vld [vmem:[%s6 + $0x20] sm:$0xff]
          %v843 = vld [vmem:[%s6 + $0x28] sm:$0xff]
          %v844 = vld [vmem:[%s6 + $0x30] sm:$0xff]
          %v845 = vld [vmem:[%s6 + $0x38] sm:$0xff]
          %v846 = vld [vmem:[%s6 + $0x40] sm:$0xff]
          %v847 = vld [vmem:[%s6 + $0x48] sm:$0xff]
          %v848 = vld [vmem:[%s6 + $0x50] sm:$0xff]
          %v849 = vld [vmem:[%s6 + $0x58] sm:$0xff]
          %v850 = vld [vmem:[%s6 + $0x60] sm:$0xff]
          %v851 = vld [vmem:[%s6 + $0x68] sm:$0xff]
          %v852 = vld [vmem:[%s6 + $0x70] sm:$0xff]
          %v853 = vld [vmem:[%s6 + $0x78] sm:$0xff]
          %v854 = vld [vmem:[%s7] sm:$0x1]
          %v856 = vlaneseq
          %v857 = vshrl.u32 %v856, 7
          %v858 = vsub.s32 0, %v857
          %v859 = vrot.slane %v854, %v858
          %861 = vmatprep.subr.mxu0 0.0
          %862 = vmatpush1.msra.mxu0 %v853
          %863 = vmatprep.subr.mxu0 0.0
          %864 = vmatpush1.msra.mxu0 %v852
          %865 = vmatprep.subr.mxu0 0.0
          %866 = vmatpush1.msra.mxu0 %v851
          %867 = vmatprep.subr.mxu0 0.0
          %868 = vmatpush1.msra.mxu0 %v850
          %869 = vmatprep.subr.mxu0 0.0
          %870 = vmatpush1.msra.mxu0 %v849
          %871 = vmatprep.subr.mxu0 0.0
          %872 = vmatpush1.msra.mxu0 %v848
          %873 = vmatprep.subr.mxu0 0.0
          %874 = vmatpush1.msra.mxu0 %v847
          %875 = vmatprep.subr.mxu0 0.0
          %876 = vmatpush1.msra.mxu0 %v846
          %877 = vmatprep.subr.mxu0 0.0
          %878 = vmatpush1.msra.mxu0 %v845
          %879 = vmatprep.subr.mxu0 0.0
          %880 = vmatpush1.msra.mxu0 %v844
          %881 = vmatprep.subr.mxu0 0.0
          %882 = vmatpush1.msra.mxu0 %v843
          %883 = vmatprep.subr.mxu0 0.0
          %884 = vmatpush1.msra.mxu0 %v842
          %885 = vmatprep.subr.mxu0 0.0
          %886 = vmatpush1.msra.mxu0 %v841
          %887 = vmatprep.subr.mxu0 0.0
          %888 = vmatpush1.msra.mxu0 %v840
          %889 = vmatprep.subr.mxu0 0.0
          %890 = vmatpush1.msra.mxu0 %v839
          %891 = vmatprep.subr.mxu0 0.0
          %892 = vmatpush1.msra.mxu0 %v838
          %893 = vmatprep.subr.mxu0 0.0
          %894 = vmatpush2.msra.mxu0 0.0
          %895 = vmatprep.subr.mxu0 0.0
          %896 = vmatpush2.msra.mxu0 0.0
          %897 = vmatprep.subr.mxu0 0.0
          %898 = vmatpush2.msra.mxu0 0.0
          %899 = vmatprep.subr.mxu0 0.0
          %900 = vmatpush2.msra.mxu0 0.0
          %901 = vmatprep.subr.mxu0 0.0
          %902 = vmatpush2.msra.mxu0 0.0
          %903 = vmatprep.subr.mxu0 0.0
          %904 = vmatpush2.msra.mxu0 0.0
          %905 = vmatprep.subr.mxu0 0.0
          %906 = vmatpush2.msra.mxu0 0.0
          %907 = vmatprep.subr.mxu0 0.0
          %908 = vmatpush2.msra.mxu0 0.0
          %909 = vmatprep.subr.mxu0 0.0
          %910 = vmatpush2.msra.mxu0 0.0
          %911 = vmatprep.subr.mxu0 0.0
          %912 = vmatpush2.msra.mxu0 0.0
          %913 = vmatprep.subr.mxu0 0.0
          %914 = vmatpush2.msra.mxu0 0.0
          %915 = vmatprep.subr.mxu0 0.0
          %916 = vmatpush2.msra.mxu0 0.0
          %917 = vmatprep.subr.mxu0 0.0
          %918 = vmatpush2.msra.mxu0 0.0
          %919 = vmatprep.subr.mxu0 0.0
          %920 = vmatpush2.msra.mxu0 0.0
          %921 = vmatprep.subr.mxu0 0.0
          %922 = vmatpush2.msra.mxu0 0.0
          %923 = vmatprep.subr.mxu0 0.0
          %924 = vmatpush2.msra.mxu0 0.0
          %925 = vmatprep.mubr.f32.mxu0 0.0
          %926 = vmatmul.mubr.f32.gmra.mxu0 %v837
          %v927 = vpop.f32.mrf.mxu0
          %v928 = vadd.f32 %v859, %v927
          %v929 = vpop.f32.mrf.mxu0
          %930 = vdwg.mxu0
          %931 = vmax.xlane.f32.xlu0 %v928
          %v932 = vpop.xlane.xlu0 %931
          %v933 = vsub.f32 %v928, %v932
          %v934 = vmul.f32 %v933, 1.442695
          %v935 = vpow.pop %v934
          %936 = vadd.xlane.f32.xlu0 %v935
          %v937 = vpop.xlane.xlu0 %936
          %v938 = vlog2.pop %v937
          %v939 = vmul.f32 %v938, 0.6931472
          %v940 = vadd.f32 %v932, %v939
          %v941 = vsub.f32 %v928, %v940
          %942 = vst [vmem:[%s415] sm:$0xff] %v941
        $region98: #{tpu_custom_call.1} parent=85 // pred_fallthru
          _
        %s943 = sand.u32 %s217, 1
        %s944 = scalar_lea.sflag [#allocation5], %s943
        %s945 = sand.u32 %s217, 1
        %s946 = smul.addr %s945, 8
        %s947 = scalar_lea.vmem [#allocation4], %s946
        // Predicated region
        $region99: #{tpu_custom_call.1} parent=85 // pred_check
          %p948 = pneg %p227
        $region100: #{tpu_custom_call.1} parent=85 // pred_check_branch
          %950 = sbr.rel (%p948) target = $region102
        $region101: #{tpu_custom_call.1} parent=85 // pred_region
          %s952 = ssub.s32 128, 128
          %953 = vsyncadd %s944, %s952
          %s954 = smul.addr %s26, 128
          %s955 = scalar_lea.hbm %s8, %s954
          %s957 = sshll.u32 %s947, 4
          %s958 = int_to_ptr.vmem [resolvable:$true] %s957
          %960 = dma.vmem_to_hbm [thread:$0]  %s958, 128, %s955, %s944
        $region102: #{tpu_custom_call.1} parent=85 // pred_fallthru
          _
      $region86: #{tpu_custom_call.1} parent=5 // pred_fallthru
        _
      %p961 = scmp.le.s32.totalorder 2, %s17
      // Predicated region
      $region103: #{tpu_custom_call.1} parent=5 // pred_check
        %p962 = pneg %p961
      $region104: #{tpu_custom_call.1} parent=5 // pred_check_branch
        %964 = sbr.rel (%p962) target = $region106
      $region105: #{tpu_custom_call.1} parent=5 // pred_region
        %s965 = ssub.s32 %s17, 2
        // Predicated region
        $region107: #{tpu_custom_call.1} parent=105 // pred_check
          %p966 = pneg %p233
        $region108: #{tpu_custom_call.1} parent=105 // pred_check_branch
          %968 = sbr.rel (%p966) target = $region110
        $region109: #{tpu_custom_call.1} parent=105 // pred_region
          %s969 = sand.u32 %s218, 1
          %s970 = scalar_lea.sflag [#allocation5], %s969
          %s971 = sand.u32 %s218, 1
          %s972 = smul.addr %s971, 8
          %s973 = scalar_lea.vmem [#allocation4], %s972
          %974 = dma.done %s970, 128
        $region110: #{tpu_custom_call.1} parent=105 // pred_fallthru
          _
      $region106: #{tpu_custom_call.1} parent=5 // pred_fallthru
        _
    $region6: #{tpu_custom_call.1} parent=1 // loop_footer
      %s21 = sadd.s32 1, %s17
    $region7: #{tpu_custom_call.1} parent=1 // loop_footer_branch
      %16 = sbr.rel target = $region3
    $region8: #{tpu_custom_call.1} parent=1 // loop_exit
      _
    %975 = vsyncpa [#allocation5], 1
    %s976 = scalar_lea.sflag [#allocation5], 1
    %977 = vsyncpa %s976, 1

</llo_original>
